<compile_context>
chip_gen: v5e
topology: v5e:2x2
jax: 0.10.0
libtpu: 0.0.40
codegen_flags: <defaults>
</compile_context>

<pallas_src>
import jax
import jax.numpy as jnp
from jax import lax
from jax.experimental import pallas as pl
from jax.experimental.pallas import tpu as pltpu

_LANES = 128      # vreg lane width
_SUBLANES = 8     # vreg sublane depth (f32)


def _round_up(x, m):
    return (x + m - 1) // m * m


def _make_nll_kernel(n_valid, tn):
    """Build the kernel, closing over static sizes.

    n_valid : true (unpadded) length of the flattened reduction axis
    tn      : lane-tile width (multiple of 128)
    """
    need_mask = (n_valid % tn) != 0        # static: only trace masking if a tail exists
    n_groups = tn // _LANES                # static Python int

    def kernel(x_ref, s_ref, num_ref, den_ref):
        # x_ref, s_ref : (TB, TN) VMEM tiles
        # num_ref/den_ref : (TB, 128) resident accumulators (lane reduce outside)
        k = pl.program_id(1)

        @pl.when(k == 0)
        def _():
            num_ref[...] = jnp.zeros_like(num_ref)
            den_ref[...] = jnp.zeros_like(den_ref)

        tb = x_ref.shape[0]

        if need_mask:
            # Hoisted out of the loop (JAX does not CSE broadcast_in_dim).
            lane_iota = lax.broadcasted_iota(jnp.int32, (tb, _LANES), 1)
            col0 = k * tn                   # first global column of this block

        def body(j, carry):
            num_p, den_p = carry
            off = pl.multiple_of(j * _LANES, _LANES)
            x = x_ref[:, pl.ds(off, _LANES)].astype(jnp.float32)
            s = s_ref[:, pl.ds(off, _LANES)].astype(jnp.float32)
            if need_mask:
                # Columns beyond n_valid hold unspecified block-padding data:
                # neutralize them (input -> 1.0 keeps the log finite, score -> 0).
                valid = lane_iota < (n_valid - col0 - off)
                x = jnp.where(valid, x, 1.0)
                s = jnp.where(valid, s, 0.0)
            # -log(x + 1e-6) * s folded into the accumulation as a subtract.
            num_p = num_p - jnp.log(x + 1e-6) * s
            den_p = den_p + s
            return num_p, den_p

        zeros = jnp.zeros((tb, _LANES), jnp.float32)
        num_p, den_p = lax.fori_loop(0, n_groups, body, (zeros, zeros),
                                     unroll=min(8, n_groups))

        num_ref[...] += num_p
        den_ref[...] += den_p

    return kernel


def nll_loss(inputs, scores, *, lane_tile=64 * 1024):
    """Pallas implementation of NLL_Loss.forward(input, scores) -> scalar."""
    assert inputs.shape == scores.shape and inputs.ndim == 3
    B, D1, D2 = inputs.shape
    N = D1 * D2

    # Batch tile: 8 sublanes (or the whole batch if smaller than a sublane tile).
    TB = _SUBLANES if B >= _SUBLANES else B
    grid_b = pl.cdiv(B, TB)
    B_out = grid_b * TB                    # output rows (full blocks); slice [:B] later

    # Lane tile: multiple of 128, capped so one input tile is TB*TN*4B <= 2 MiB.
    TN = min(_round_up(N, _LANES), _round_up(lane_tile, _LANES))
    grid_k = pl.cdiv(N, TN)

    x2 = inputs.reshape(B, N)              # free (row-major contiguous)
    s2 = scores.reshape(B, N)

    kernel = _make_nll_kernel(N, TN)

    num_acc, den_acc = pl.pallas_call(
        kernel,
        out_shape=(
            jax.ShapeDtypeStruct((B_out, _LANES), jnp.float32),
            jax.ShapeDtypeStruct((B_out, _LANES), jnp.float32),
        ),
        grid_spec=pltpu.PrefetchScalarGridSpec(
            num_scalar_prefetch=0,
            grid=(grid_b, grid_k),
            in_specs=[
                pl.BlockSpec((TB, TN), lambda b, k: (b, k)),
                pl.BlockSpec((TB, TN), lambda b, k: (b, k)),
            ],
            out_specs=(
                pl.BlockSpec((TB, _LANES), lambda b, k: (b, 0)),
                pl.BlockSpec((TB, _LANES), lambda b, k: (b, 0)),
            ),
        ),
        compiler_params=pltpu.CompilerParams(
            # batch axis parallel (uses the 2nd TC on v7x); reduction sequential
            dimension_semantics=("parallel", "arbitrary"),
            vmem_limit_bytes=32 * 1024 * 1024,
        ),
    )(x2, s2)

    # Tiny epilogue in plain JAX: cross-lane reduce, per-batch divide, mean.
    # (sum(scores)==0 for a batch yields inf/nan, matching PyTorch semantics.)
    num = jnp.sum(num_acc[:B], axis=-1)
    den = jnp.sum(den_acc[:B], axis=-1)
    return jnp.mean(num / den)


def nll_loss_ref(inputs, scores):
    """Pure-JAX reference matching the PyTorch module."""
    num = jnp.sum(-jnp.log(inputs + 1e-6) * scores, axis=(1, 2))
    den = jnp.sum(scores, axis=(1, 2))
    return jnp.mean(num / den)


if __name__ == "__main__":
    key = jax.random.PRNGKey(0)

    # (shape, lane_tile override or None) -- exercises: no-tail, lane tail,
    # partial batch block, multi-step reduction axis with tail masking.
    cases = [
        ((2, 16, 16), None),     # B<8, N multiple of 128 (no mask)
        ((3, 20, 40), None),     # B<8, ragged N (mask)
        ((10, 48, 50), None),    # partial batch block, ragged N
        ((10, 48, 50), 512),     # multi-block reduction + tail mask
        ((16, 33, 65), None),    # two full batch blocks, ragged N
    ]

    for (B, D1, D2), lt in cases:
        key, k1, k2 = jax.random.split(key, 3)
        # input is probability-like (positive); scores nonnegative.
        x = jax.random.uniform(k1, (B, D1, D2), jnp.float32,
                               minval=0.01, maxval=1.0)
        s = jax.random.uniform(k2, (B, D1, D2), jnp.float32,
                               minval=0.0, maxval=1.0)

        if lt is None:
            loss = nll_loss(x, s)
        else:
            loss = nll_loss(x, s, lane_tile=lt)
        jax.block_until_ready(loss)

        ref = nll_loss_ref(x, s)
        assert jnp.allclose(loss, ref, rtol=1e-5, atol=1e-5), \
            (B, D1, D2, lt, loss, ref)

    print("KERNEL_OK")
</pallas_src>

<mosaic_0001>
module attributes {stable_mosaic.version = 11 : i64} {
  func.func @kernel(%arg0: i32, %arg1: i32, %arg2: memref<2x256xf32, #tpu.memory_space<vmem>>, %arg3: memref<2x256xf32, #tpu.memory_space<vmem>>, %arg4: memref<2x128xf32, #tpu.memory_space<vmem>>, %arg5: memref<2x128xf32, #tpu.memory_space<vmem>>) attributes {dimension_semantics = [#tpu.dimension_semantics<parallel>, #tpu.dimension_semantics<arbitrary>], iteration_bounds = array<i64: 1, 1>, scalar_prefetch = 0 : i64, scratch_operands = 0 : i64, tpu.core_type = #tpu.core_type<tc>, window_params = [{transform_indices = @transform_0, window_bounds = array<i64: 2, 256>}, {transform_indices = @transform_1, window_bounds = array<i64: 2, 256>}, {transform_indices = @transform_2, window_bounds = array<i64: 2, 128>}, {transform_indices = @transform_3, window_bounds = array<i64: 2, 128>}]} {
    %c0_i32 = arith.constant 0 : i32
    %0 = arith.cmpi eq, %arg1, %c0_i32 : i32
    %1 = arith.extui %0 : i1 to i32
    %c0_i32_0 = arith.constant 0 : i32
    %2 = arith.cmpi ne, %1, %c0_i32_0 : i32
    scf.if %2 {
      %cst_16 = arith.constant 0.000000e+00 : f32
      %34 = vector.broadcast %cst_16 : f32 to vector<2x128xf32>
      %c0_17 = arith.constant 0 : index
      %c0_18 = arith.constant 0 : index
      %35 = vector.load %arg4[%c0_17, %c0_18] : memref<2x128xf32, #tpu.memory_space<vmem>>, vector<2x128xf32>
      tpu.vector_store %arg4[%c0_17, %c0_18], %34 {strides = array<i32>} : memref<2x128xf32, #tpu.memory_space<vmem>>, vector<2x128xf32>,
      %cst_19 = arith.constant 0.000000e+00 : f32
      %36 = vector.broadcast %cst_19 : f32 to vector<2x128xf32>
      %c0_20 = arith.constant 0 : index
      %c0_21 = arith.constant 0 : index
      %37 = vector.load %arg5[%c0_20, %c0_21] : memref<2x128xf32, #tpu.memory_space<vmem>>, vector<2x128xf32>
      tpu.vector_store %arg5[%c0_20, %c0_21], %36 {strides = array<i32>} : memref<2x128xf32, #tpu.memory_space<vmem>>, vector<2x128xf32>,
    } else {
    }
    %cst = arith.constant 0.000000e+00 : f32
    %3 = vector.broadcast %cst : f32 to vector<2x128xf32>
    %c0_i32_1 = arith.constant 0 : i32
    %c128_i32 = arith.constant 128 : i32
    %4 = arith.muli %c0_i32_1, %c128_i32 : i32
    %5 = tpu.assume_multiple %4, 128 : i32
    %c0 = arith.constant 0 : index
    %6 = arith.index_cast %5 : i32 to index
    %7 = vector.load %arg2[%c0, %6] : memref<2x256xf32, #tpu.memory_space<vmem>>, vector<2x128xf32>
    %c0_2 = arith.constant 0 : index
    %8 = arith.index_cast %5 : i32 to index
    %9 = vector.load %arg3[%c0_2, %8] : memref<2x256xf32, #tpu.memory_space<vmem>>, vector<2x128xf32>
    %cst_3 = arith.constant 9.99999997E-7 : f32
    %10 = vector.broadcast %cst_3 : f32 to vector<2x128xf32>
    %11 = arith.addf %7, %10 : vector<2x128xf32>
    %12 = math.log %11 : vector<2x128xf32>
    %13 = arith.mulf %12, %9 : vector<2x128xf32>
    %14 = arith.subf %3, %13 : vector<2x128xf32>
    %15 = arith.addf %3, %9 : vector<2x128xf32>
    %c1_i32 = arith.constant 1 : i32
    %c128_i32_4 = arith.constant 128 : i32
    %16 = arith.muli %c1_i32, %c128_i32_4 : i32
    %17 = tpu.assume_multiple %16, 128 : i32
    %c0_5 = arith.constant 0 : index
    %18 = arith.index_cast %17 : i32 to index
    %19 = vector.load %arg2[%c0_5, %18] : memref<2x256xf32, #tpu.memory_space<vmem>>, vector<2x128xf32>
    %c0_6 = arith.constant 0 : index
    %20 = arith.index_cast %17 : i32 to index
    %21 = vector.load %arg3[%c0_6, %20] : memref<2x256xf32, #tpu.memory_space<vmem>>, vector<2x128xf32>
    %cst_7 = arith.constant 9.99999997E-7 : f32
    %22 = vector.broadcast %cst_7 : f32 to vector<2x128xf32>
    %23 = arith.addf %19, %22 : vector<2x128xf32>
    %24 = math.log %23 : vector<2x128xf32>
    %25 = arith.mulf %24, %21 : vector<2x128xf32>
    %26 = arith.subf %14, %25 : vector<2x128xf32>
    %27 = arith.addf %15, %21 : vector<2x128xf32>
    %c2_i32 = arith.constant 2 : i32
    %c0_8 = arith.constant 0 : index
    %c0_9 = arith.constant 0 : index
    %28 = vector.load %arg4[%c0_8, %c0_9] : memref<2x128xf32, #tpu.memory_space<vmem>>, vector<2x128xf32>
    %29 = arith.addf %28, %26 : vector<2x128xf32>
    %c0_10 = arith.constant 0 : index
    %c0_11 = arith.constant 0 : index
    %30 = vector.load %arg4[%c0_10, %c0_11] : memref<2x128xf32, #tpu.memory_space<vmem>>, vector<2x128xf32>
    tpu.vector_store %arg4[%c0_10, %c0_11], %29 {strides = array<i32>} : memref<2x128xf32, #tpu.memory_space<vmem>>, vector<2x128xf32>,
    %c0_12 = arith.constant 0 : index
    %c0_13 = arith.constant 0 : index
    %31 = vector.load %arg5[%c0_12, %c0_13] : memref<2x128xf32, #tpu.memory_space<vmem>>, vector<2x128xf32>
    %32 = arith.addf %31, %27 : vector<2x128xf32>
    %c0_14 = arith.constant 0 : index
    %c0_15 = arith.constant 0 : index
    %33 = vector.load %arg5[%c0_14, %c0_15] : memref<2x128xf32, #tpu.memory_space<vmem>>, vector<2x128xf32>
    tpu.vector_store %arg5[%c0_14, %c0_15], %32 {strides = array<i32>} : memref<2x128xf32, #tpu.memory_space<vmem>>, vector<2x128xf32>,
    return
  }
  func.func @transform_0(%arg0: i32, %arg1: i32) -> (i32, i32) {
    %c0_i32 = arith.constant 0 : i32
    return %arg0, %arg1 : i32, i32
  }
  func.func @transform_1(%arg0: i32, %arg1: i32) -> (i32, i32) {
    %c0_i32 = arith.constant 0 : i32
    return %arg0, %arg1 : i32, i32
  }
  func.func @transform_2(%arg0: i32, %arg1: i32) -> (i32, i32) {
    %c0_i32 = arith.constant 0 : i32
    %c0_i32_0 = arith.constant 0 : i32
    return %arg0, %c0_i32 : i32, i32
  }
  func.func @transform_3(%arg0: i32, %arg1: i32) -> (i32, i32) {
    %c0_i32 = arith.constant 0 : i32
    %c0_i32_0 = arith.constant 0 : i32
    return %arg0, %c0_i32 : i32, i32
  }
}

</mosaic_0001>

<llo_original>
// kernel: tpu_custom_call.1
$region0: #{tpu_custom_call.1}
  #allocation0 [shape = 'u32[]', space=smem, size = 0x4, offset = 0x4, fixed_abs, tag = 'smem constant byte address 0x4 - core index']
  #allocation1 [shape = 'u32[72,128]{1,0:T(1,128)}', space=vmem, size = 0x9000, scoped, tag = 'internal scratch']
  %s0 = inlined_call_operand.hbm [shape: f32[2,256], index: 0, kind: input, shape index: {}]
  %s1 = inlined_call_operand.hbm [shape: f32[2,256], index: 1, kind: input, shape index: {}]
  %s2 = inlined_call_operand.hbm [shape: f32[2,128], index: 2, kind: output, shape index: {0}]
  %s3 = inlined_call_operand.hbm [shape: f32[2,128], index: 3, kind: output, shape index: {1}]
  %4 = xla_tuple %s2, %s3
  %s5 = sld [smem:[#allocation0]]
  $region38: #{tpu_custom_call.1} parent=0
    _
  %s7 = ssub.s32 1, %s5
  %s8 = scalar_select 0, %s7, %s5
  $region1: #{tpu_custom_call.1} parent=0
    #allocation2 [shape = 'u8[2048]{0}', space=vmem, size = 0x800, scoped, tag = 'input window, operand 0, single buffered']
    #allocation3 [shape = 's32[1]{0}', space=sflag, size = 0x4, scoped, tag = 'scoped memory for tpu_custom_call.1']
    #allocation4 [shape = 's32[1]{0}', space=sflag, size = 0x4, scoped, tag = 'scoped memory for tpu_custom_call.1']
    #allocation5 [shape = 'u8[2048]{0}', space=vmem, size = 0x800, scoped, tag = 'input window, operand 1, single buffered']
    #allocation6 [shape = 's32[1]{0}', space=sflag, size = 0x4, scoped, tag = 'scoped memory for tpu_custom_call.1']
    #allocation7 [shape = 'u8[1024]{0}', space=vmem, size = 0x400, scoped, tag = 'output window, operand 0, single buffered']
    #allocation8 [shape = 'u8[1024]{0}', space=vmem, size = 0x400, scoped, tag = 'output window, operand 1, single buffered']
    #allocation9 [shape = 's32[1]{0}', space=sflag, size = 0x4, scoped, tag = 'scoped memory for tpu_custom_call.1']
    %9 = vsyncpa [#allocation3], 0
    %10 = vsyncpa [#allocation6], 0
    %11 = vsyncpa [#allocation4], 0
    %12 = vsyncpa [#allocation9], 0
    // Predicated region
    $region2: #{tpu_custom_call.1} parent=1 // pred_check
      _
    $region3: #{tpu_custom_call.1} parent=1 // pred_check_branch
      %14 = sbr.rel (0) target = $region5
    $region4: #{tpu_custom_call.1} parent=1 // pred_region
      %16 = vsyncadd [#allocation3], 0
      %s18 = sshll.u32 %s0, 4
      %s19 = int_to_ptr.hbm [resolvable:$true] %s18
      %s20 = sshll.u32 [#allocation2], 4
      %s21 = int_to_ptr.vmem [resolvable:$true] %s20
      %23 = dma.hbm_to_vmem [thread:$0]  %s19, 64, %s21, [#allocation3]
    $region5: #{tpu_custom_call.1} parent=1 // pred_fallthru
      _
    // Predicated region
    $region6: #{tpu_custom_call.1} parent=1 // pred_check
      _
    $region7: #{tpu_custom_call.1} parent=1 // pred_check_branch
      %25 = sbr.rel (0) target = $region9
    $region8: #{tpu_custom_call.1} parent=1 // pred_region
      %27 = vsyncadd [#allocation6], 0
      %s29 = sshll.u32 %s1, 4
      %s30 = int_to_ptr.hbm [resolvable:$true] %s29
      %s31 = sshll.u32 [#allocation5], 4
      %s32 = int_to_ptr.vmem [resolvable:$true] %s31
      %34 = dma.hbm_to_vmem [thread:$0]  %s30, 64, %s32, [#allocation6]
    $region9: #{tpu_custom_call.1} parent=1 // pred_fallthru
      _
    // Predicated region
    $region10: #{tpu_custom_call.1} parent=1 // pred_check
      _
    $region11: #{tpu_custom_call.1} parent=1 // pred_check_branch
      %36 = sbr.rel (0) target = $region13
    $region12: #{tpu_custom_call.1} parent=1 // pred_region
      %38 = dma.done [#allocation3], 64
    $region13: #{tpu_custom_call.1} parent=1 // pred_fallthru
      _
    // Predicated region
    $region14: #{tpu_custom_call.1} parent=1 // pred_check
      _
    $region15: #{tpu_custom_call.1} parent=1 // pred_check_branch
      %40 = sbr.rel (0) target = $region17
    $region16: #{tpu_custom_call.1} parent=1 // pred_region
      %42 = dma.done [#allocation6], 64
    $region17: #{tpu_custom_call.1} parent=1 // pred_fallthru
      _
    %p43 = scmp.eq.s32.totalorder 0, 0
    // Predicated region
    $region18: #{tpu_custom_call.1} parent=1 // pred_check
      %p44 = pneg %p43
    $region19: #{tpu_custom_call.1} parent=1 // pred_check_branch
      %46 = sbr.rel (%p44) target = $region21
    $region20: #{tpu_custom_call.1} parent=1 // pred_region
      %47 = vst [vmem:[#allocation7] sm:$0x3] 0.0
      %48 = vst [vmem:[#allocation8] sm:$0x3] 0.0
    $region21: #{tpu_custom_call.1} parent=1 // pred_fallthru
      _
    %v49 = vld [vmem:[#allocation2] sm:$0x3]
    %v50 = vld [vmem:[#allocation5] sm:$0x3]
    %v51 = vadd.f32 %v49, 1e-06
    %v52 = vlog2.pop %v51
    %v53 = vmul.f32 %v52, 0.6931472
    %v54 = vmul.f32 %v53, %v50
    %v55 = vsub.f32 0.0, %v54
    %v56 = vadd.f32 %v50, 0.0
    %s57 = scalar_lea.vmem [#allocation2], 2
    %v58 = vld [vmem:[%s57] sm:$0x3]
    %s59 = scalar_lea.vmem [#allocation5], 2
    %v60 = vld [vmem:[%s59] sm:$0x3]
    %v61 = vadd.f32 %v58, 1e-06
    %v62 = vlog2.pop %v61
    %v63 = vmul.f32 %v62, 0.6931472
    %v64 = vmul.f32 %v63, %v60
    %v65 = vsub.f32 %v55, %v64
    %v66 = vadd.f32 %v56, %v60
    %v67 = vld [vmem:[#allocation7] sm:$0x3]
    %v68 = vadd.f32 %v67, %v65
    %69 = vst [vmem:[#allocation7] sm:$0x3] %v68
    %v70 = vld [vmem:[#allocation8] sm:$0x3]
    %v71 = vadd.f32 %v70, %v66
    %72 = vst [vmem:[#allocation8] sm:$0x3] %v71
    // Predicated region
    $region22: #{tpu_custom_call.1} parent=1 // pred_check
      _
    $region23: #{tpu_custom_call.1} parent=1 // pred_check_branch
      %74 = sbr.rel (0) target = $region25
    $region24: #{tpu_custom_call.1} parent=1 // pred_region
      %76 = vsyncadd [#allocation4], 0
      %s78 = sshll.u32 [#allocation7], 4
      %s79 = int_to_ptr.vmem [resolvable:$true] %s78
      %s80 = sshll.u32 %s2, 4
      %s81 = int_to_ptr.hbm [resolvable:$true] %s80
      %83 = dma.vmem_to_hbm [thread:$0]  %s79, 32, %s81, [#allocation4]
    $region25: #{tpu_custom_call.1} parent=1 // pred_fallthru
      _
    // Predicated region
    $region26: #{tpu_custom_call.1} parent=1 // pred_check
      _
    $region27: #{tpu_custom_call.1} parent=1 // pred_check_branch
      %85 = sbr.rel (0) target = $region29
    $region28: #{tpu_custom_call.1} parent=1 // pred_region
      %87 = vsyncadd [#allocation9], 0
      %s89 = sshll.u32 [#allocation8], 4
      %s90 = int_to_ptr.vmem [resolvable:$true] %s89
      %s91 = sshll.u32 %s3, 4
      %s92 = int_to_ptr.hbm [resolvable:$true] %s91
      %94 = dma.vmem_to_hbm [thread:$0]  %s90, 32, %s92, [#allocation9]
    $region29: #{tpu_custom_call.1} parent=1 // pred_fallthru
      _
    // Predicated region
    $region30: #{tpu_custom_call.1} parent=1 // pred_check
      _
    $region31: #{tpu_custom_call.1} parent=1 // pred_check_branch
      %96 = sbr.rel (0) target = $region33
    $region32: #{tpu_custom_call.1} parent=1 // pred_region
      %98 = dma.done [#allocation4], 32
    $region33: #{tpu_custom_call.1} parent=1 // pred_fallthru
      _
    // Predicated region
    $region34: #{tpu_custom_call.1} parent=1 // pred_check
      _
    $region35: #{tpu_custom_call.1} parent=1 // pred_check_branch
      %100 = sbr.rel (0) target = $region37
    $region36: #{tpu_custom_call.1} parent=1 // pred_region
      %102 = dma.done [#allocation9], 32
    $region37: #{tpu_custom_call.1} parent=1 // pred_fallthru
      _
    %103 = vsyncpa [#allocation3], 1
    %104 = vsyncpa [#allocation6], 1
    %105 = vsyncpa [#allocation4], 1
    %106 = vsyncpa [#allocation9], 1

</llo_original>
